<compile_context>
chip_gen: v7x
topology: tpu7x:2x2x1
jax: 0.10.0
libtpu: 0.0.40
codegen_flags: <defaults>
</compile_context>

<pallas_src>
import jax
import jax.numpy as jnp
from jax.experimental import pallas as pl
from jax.experimental.pallas import tpu as pltpu


def cfg_denoiser_kernel(scale_ref, sig_ref, x_ref, u_ref, c_ref,
                        wblk_ref, w2t_ref, out_ref):
    """Fused inner-model + CFG combine for one packed block of batch elements.

    scale_ref : SMEM (1,)        f32  cond_scale (scalar-prefetched)
    sig_ref   : VMEM (R, 1)      f32  per-row sigma column (R = bpb*C rows)
    x_ref     : VMEM (R, HW)     x dtype, lane-dense packed latent rows
    u_ref     : VMEM (bpb, S, D) uncond embeddings for this block
    c_ref     : VMEM (bpb, S, D) cond embeddings for this block
    wblk_ref  : VMEM (R, R)      f32  kron(I_bpb, W1^T) block-diag channel mix
    w2t_ref   : VMEM (C, D)      f32  W2^T conditioning projection
    out_ref   : VMEM (R, HW)     x dtype
    """
    R, _ = x_ref.shape
    bpb = u_ref.shape[0]
    scale = scale_ref[0]

    x = x_ref[...].astype(jnp.float32)                         # (R, HW)
    wblk = wblk_ref[...]                                       # (R, R)

    # ---- channel mix (shared by both CFG branches since x_in = cat([x, x])).
    # At tiny R the MXU is degenerate (M=K=R): do R column-broadcast FMAs on
    # the VPU instead.  For real channel counts use the MXU with 128/256-aligned
    # tiles (guarded below).
    if R >= 128:
        h = jnp.dot(wblk, x, preferred_element_type=jnp.float32)
    else:
        h = wblk[:, 0:1] * x[0:1, :]
        for k in range(1, R):
            h = h + wblk[:, k:k + 1] * x[k:k + 1, :]           # (R,1)*(1,HW)

    # ---- sigma modulation: per-row column broadcast (sigma constant within a
    # batch element's C rows).
    d = h * sig_ref[...]                                       # (R, HW)

    # ---- conditioning bias with the CFG combine folded onto the pooled row:
    # bias_mix = W2^T (pooled_u + scale*(pooled_c - pooled_u)).  Exactly equal
    # (up to fp reassociation) to den_u + scale*(den_c - den_u) because the
    # pooling/projection are linear.  All work stays on (bpb,D)/(C,1) shapes.
    u = u_ref[...].astype(jnp.float32)                         # (bpb, S, D)
    c = c_ref[...].astype(jnp.float32)
    pooled_u = jnp.mean(u, axis=1)                             # (bpb, D)
    pooled_c = jnp.mean(c, axis=1)                             # (bpb, D)
    pooled_mix = pooled_u + (pooled_c - pooled_u) * scale      # (bpb, D)

    w2t = w2t_ref[...]                                         # (C, D)
    cols = [jnp.sum(w2t * pooled_mix[j:j + 1, :], axis=1, keepdims=True)  # (C,1)
            for j in range(bpb)]
    bias_col = cols[0] if bpb == 1 else jnp.concatenate(cols, axis=0)     # (R,1)

    # ---- single (R, HW) add + store in the caller's dtype (lane-dense vst).
    out_ref[...] = (d + bias_col).astype(out_ref.dtype)


def cfg_denoiser(x, sigma, uncond, cond, cond_scale, w1, w2):
    """Full CFGDenoiser.forward. x: (B, C, H, W) NCHW, returns (B, C, H, W)."""
    B, C, H, W = x.shape
    HW = H * W
    S, D = uncond.shape[1], uncond.shape[2]

    # --- pick batch elements per block so rows-per-block fills the 8 sublanes
    # of every f32 vreg; fall back to the whole batch in one block (block ==
    # full array dims is always a legal BlockSpec).  When C % 8 == 0 this keeps
    # bpb == 1, i.e. a batch grid of size >= 2 for v7x's two TensorCores.
    bpb = B
    for cand in range(1, B + 1):
        if B % cand == 0 and (cand * C) % 8 == 0:
            bpb = cand
            break
    R = bpb * C
    n_blocks = B // bpb

    # --- layout plumbing only: contiguous reshape (free), tiny weight prep,
    # per-row sigma column.  No batch duplication, no activation transposes,
    # no wrapper dtype round-trips on the activations.
    x2 = x.reshape(B * C, HW)                                      # native dtype
    sig_col = jnp.repeat(sigma.astype(jnp.float32), C)[:, None]   # (B*C, 1)
    w1t = jnp.asarray(w1, jnp.float32).T                          # (C, C)
    wblk = jnp.kron(jnp.eye(bpb, dtype=jnp.float32), w1t)         # (R, R)
    w2t = jnp.asarray(w2, jnp.float32).T                          # (C, D)
    sc = jnp.asarray([cond_scale], dtype=jnp.float32)             # (1,) -> SMEM

    # NOTE: at real diffusion shapes (C >= 128, HW = 64*64) tile HW and budget
    # VMEM per target (64 MiB on v7x -> roughly half the v6e HW tile, set
    # vmem_limit_bytes explicitly) and use pl.Buffered(3) on x/out on v5e/v6e.
    out = pl.pallas_call(
        cfg_denoiser_kernel,
        out_shape=jax.ShapeDtypeStruct((B * C, HW), x.dtype),
        grid_spec=pltpu.PrefetchScalarGridSpec(
            num_scalar_prefetch=1,                                 # cond_scale
            grid=(n_blocks,),
            in_specs=[
                pl.BlockSpec((R, 1), lambda i, s: (i, 0)),         # sigma col
                pl.BlockSpec((R, HW), lambda i, s: (i, 0)),        # x rows
                pl.BlockSpec((bpb, S, D), lambda i, s: (i, 0, 0)),  # uncond
                pl.BlockSpec((bpb, S, D), lambda i, s: (i, 0, 0)),  # cond
                pl.BlockSpec((R, R), lambda i, s: (0, 0)),         # kron(I, W1^T)
                pl.BlockSpec((C, D), lambda i, s: (0, 0)),         # W2^T
            ],
            out_specs=pl.BlockSpec((R, HW), lambda i, s: (i, 0)),
        ),
        compiler_params=pltpu.CompilerParams(
            dimension_semantics=("parallel",)),                    # independent blocks
    )(sc, sig_col, x2, uncond, cond, wblk, w2t)

    return out.reshape(B, C, H, W)


def cfg_denoiser_ref(x, sigma, uncond, cond, cond_scale, w1, w2):
    """Pure-JAX reference mirroring the PyTorch module structure exactly."""
    B, C, H, W = x.shape
    HW = H * W

    def inner(xb, sb, cb):                       # xb: (C,H,W), cb: (S,D)
        xf = xb.reshape(C, HW).T                 # (HW, C)
        h = xf @ w1                              # (HW, C)
        bias = jnp.mean(cb, axis=0) @ w2         # (C,)
        return (h * sb + bias[None, :]).T.reshape(C, H, W)

    x_in = jnp.concatenate([x, x], axis=0)
    sigma_in = jnp.concatenate([sigma, sigma], axis=0)
    cond_in = jnp.concatenate([uncond, cond], axis=0)
    den = jax.vmap(inner)(x_in, sigma_in, cond_in)
    u, c = den[:B], den[B:]
    return u + (c - u) * cond_scale


if __name__ == "__main__":
    B, C, H, W = 2, 4, 16, 16
    S, D = 8, 32
    cond_scale = 7.5

    key = jax.random.PRNGKey(0)
    kx, ks, ku, kc, kw1, kw2 = jax.random.split(key, 6)

    x = jax.random.normal(kx, (B, C, H, W), dtype=jnp.float32)
    sigma = jax.random.uniform(ks, (B,), dtype=jnp.float32, minval=0.5, maxval=2.0)
    uncond = jax.random.normal(ku, (B, S, D), dtype=jnp.float32)
    cond = jax.random.normal(kc, (B, S, D), dtype=jnp.float32)

    # deterministic synthetic "inner model" parameters
    w1 = jax.random.normal(kw1, (C, C), dtype=jnp.float32) * 0.1
    w2 = jax.random.normal(kw2, (D, C), dtype=jnp.float32) * 0.1

    out = cfg_denoiser(x, sigma, uncond, cond, cond_scale, w1, w2)
    out = jax.block_until_ready(out)

    ref = cfg_denoiser_ref(x, sigma, uncond, cond, cond_scale, w1, w2)
    assert out.shape == (B, C, H, W)
    assert out.dtype == x.dtype
    assert jnp.allclose(out, ref, atol=1e-4, rtol=1e-4), "mismatch vs reference"

    print("KERNEL_OK")
</pallas_src>

<mosaic_0001>
module attributes {stable_mosaic.version = 11 : i64} {
  func.func @cfg_denoiser_kernel(%arg0: i32, %arg1: memref<1xf32, #tpu.memory_space<smem>>, %arg2: memref<8x1xf32, #tpu.memory_space<vmem>>, %arg3: memref<8x256xf32, #tpu.memory_space<vmem>>, %arg4: memref<2x8x32xf32, #tpu.memory_space<vmem>>, %arg5: memref<2x8x32xf32, #tpu.memory_space<vmem>>, %arg6: memref<8x8xf32, #tpu.memory_space<vmem>>, %arg7: memref<4x32xf32, #tpu.memory_space<vmem>>, %arg8: memref<8x256xf32, #tpu.memory_space<vmem>>) attributes {dimension_semantics = [#tpu.dimension_semantics<parallel>], iteration_bounds = array<i64: 1>, scalar_prefetch = 1 : i64, scratch_operands = 0 : i64, tpu.core_type = #tpu.core_type<tc>, window_params = [{transform_indices = @transform_0, window_bounds = array<i64: 8, 1>}, {transform_indices = @transform_1, window_bounds = array<i64: 8, 256>}, {transform_indices = @transform_2, window_bounds = array<i64: 2, 8, 32>}, {transform_indices = @transform_3, window_bounds = array<i64: 2, 8, 32>}, {pipeline_mode = #tpu.pipeline_mode<synchronous>, transform_indices = @transform_4, window_bounds = array<i64: 8, 8>}, {pipeline_mode = #tpu.pipeline_mode<synchronous>, transform_indices = @transform_5, window_bounds = array<i64: 4, 32>}, {transform_indices = @transform_6, window_bounds = array<i64: 8, 256>}]} {
    %c0 = arith.constant 0 : index
    %0 = memref.load %arg1[%c0] : memref<1xf32, #tpu.memory_space<smem>>
    %c0_0 = arith.constant 0 : index
    %c0_1 = arith.constant 0 : index
    %1 = vector.load %arg3[%c0_0, %c0_1] : memref<8x256xf32, #tpu.memory_space<vmem>>, vector<8x256xf32>
    %c0_2 = arith.constant 0 : index
    %c0_3 = arith.constant 0 : index
    %2 = vector.load %arg6[%c0_2, %c0_3] : memref<8x8xf32, #tpu.memory_space<vmem>>, vector<8x8xf32>
    %3 = vector.extract_strided_slice %2 {offsets = [0, 0], sizes = [8, 1], strides = [1, 1]} : vector<8x8xf32> to vector<8x1xf32>
    %4 = vector.extract_strided_slice %1 {offsets = [0, 0], sizes = [1, 256], strides = [1, 1]} : vector<8x256xf32> to vector<1x256xf32>
    %5 = vector.broadcast %3 : vector<8x1xf32> to vector<8x256xf32>
    %6 = vector.broadcast %4 : vector<1x256xf32> to vector<8x256xf32>
    %7 = arith.mulf %5, %6 : vector<8x256xf32>
    %8 = vector.extract_strided_slice %2 {offsets = [0, 1], sizes = [8, 1], strides = [1, 1]} : vector<8x8xf32> to vector<8x1xf32>
    %9 = vector.extract_strided_slice %1 {offsets = [1, 0], sizes = [1, 256], strides = [1, 1]} : vector<8x256xf32> to vector<1x256xf32>
    %10 = vector.broadcast %8 : vector<8x1xf32> to vector<8x256xf32>
    %11 = vector.broadcast %9 : vector<1x256xf32> to vector<8x256xf32>
    %12 = arith.mulf %10, %11 : vector<8x256xf32>
    %13 = arith.addf %7, %12 : vector<8x256xf32>
    %14 = vector.extract_strided_slice %2 {offsets = [0, 2], sizes = [8, 1], strides = [1, 1]} : vector<8x8xf32> to vector<8x1xf32>
    %15 = vector.extract_strided_slice %1 {offsets = [2, 0], sizes = [1, 256], strides = [1, 1]} : vector<8x256xf32> to vector<1x256xf32>
    %16 = vector.broadcast %14 : vector<8x1xf32> to vector<8x256xf32>
    %17 = vector.broadcast %15 : vector<1x256xf32> to vector<8x256xf32>
    %18 = arith.mulf %16, %17 : vector<8x256xf32>
    %19 = arith.addf %13, %18 : vector<8x256xf32>
    %20 = vector.extract_strided_slice %2 {offsets = [0, 3], sizes = [8, 1], strides = [1, 1]} : vector<8x8xf32> to vector<8x1xf32>
    %21 = vector.extract_strided_slice %1 {offsets = [3, 0], sizes = [1, 256], strides = [1, 1]} : vector<8x256xf32> to vector<1x256xf32>
    %22 = vector.broadcast %20 : vector<8x1xf32> to vector<8x256xf32>
    %23 = vector.broadcast %21 : vector<1x256xf32> to vector<8x256xf32>
    %24 = arith.mulf %22, %23 : vector<8x256xf32>
    %25 = arith.addf %19, %24 : vector<8x256xf32>
    %26 = vector.extract_strided_slice %2 {offsets = [0, 4], sizes = [8, 1], strides = [1, 1]} : vector<8x8xf32> to vector<8x1xf32>
    %27 = vector.extract_strided_slice %1 {offsets = [4, 0], sizes = [1, 256], strides = [1, 1]} : vector<8x256xf32> to vector<1x256xf32>
    %28 = vector.broadcast %26 : vector<8x1xf32> to vector<8x256xf32>
    %29 = vector.broadcast %27 : vector<1x256xf32> to vector<8x256xf32>
    %30 = arith.mulf %28, %29 : vector<8x256xf32>
    %31 = arith.addf %25, %30 : vector<8x256xf32>
    %32 = vector.extract_strided_slice %2 {offsets = [0, 5], sizes = [8, 1], strides = [1, 1]} : vector<8x8xf32> to vector<8x1xf32>
    %33 = vector.extract_strided_slice %1 {offsets = [5, 0], sizes = [1, 256], strides = [1, 1]} : vector<8x256xf32> to vector<1x256xf32>
    %34 = vector.broadcast %32 : vector<8x1xf32> to vector<8x256xf32>
    %35 = vector.broadcast %33 : vector<1x256xf32> to vector<8x256xf32>
    %36 = arith.mulf %34, %35 : vector<8x256xf32>
    %37 = arith.addf %31, %36 : vector<8x256xf32>
    %38 = vector.extract_strided_slice %2 {offsets = [0, 6], sizes = [8, 1], strides = [1, 1]} : vector<8x8xf32> to vector<8x1xf32>
    %39 = vector.extract_strided_slice %1 {offsets = [6, 0], sizes = [1, 256], strides = [1, 1]} : vector<8x256xf32> to vector<1x256xf32>
    %40 = vector.broadcast %38 : vector<8x1xf32> to vector<8x256xf32>
    %41 = vector.broadcast %39 : vector<1x256xf32> to vector<8x256xf32>
    %42 = arith.mulf %40, %41 : vector<8x256xf32>
    %43 = arith.addf %37, %42 : vector<8x256xf32>
    %44 = vector.extract_strided_slice %2 {offsets = [0, 7], sizes = [8, 1], strides = [1, 1]} : vector<8x8xf32> to vector<8x1xf32>
    %45 = vector.extract_strided_slice %1 {offsets = [7, 0], sizes = [1, 256], strides = [1, 1]} : vector<8x256xf32> to vector<1x256xf32>
    %46 = vector.broadcast %44 : vector<8x1xf32> to vector<8x256xf32>
    %47 = vector.broadcast %45 : vector<1x256xf32> to vector<8x256xf32>
    %48 = arith.mulf %46, %47 : vector<8x256xf32>
    %49 = arith.addf %43, %48 : vector<8x256xf32>
    %c0_4 = arith.constant 0 : index
    %c0_5 = arith.constant 0 : index
    %50 = vector.load %arg2[%c0_4, %c0_5] : memref<8x1xf32, #tpu.memory_space<vmem>>, vector<8x1xf32>
    %51 = vector.broadcast %50 : vector<8x1xf32> to vector<8x256xf32>
    %52 = arith.mulf %49, %51 : vector<8x256xf32>
    %c0_6 = arith.constant 0 : index
    %c0_7 = arith.constant 0 : index
    %c0_8 = arith.constant 0 : index
    %53 = vector.load %arg4[%c0_6, %c0_7, %c0_8] : memref<2x8x32xf32, #tpu.memory_space<vmem>>, vector<2x8x32xf32>
    %c0_9 = arith.constant 0 : index
    %c0_10 = arith.constant 0 : index
    %c0_11 = arith.constant 0 : index
    %54 = vector.load %arg5[%c0_9, %c0_10, %c0_11] : memref<2x8x32xf32, #tpu.memory_space<vmem>>, vector<2x8x32xf32>
    %cst = arith.constant dense<0.000000e+00> : vector<2x32xf32>
    %55 = vector.multi_reduction <add>, %53, %cst [1] : vector<2x8x32xf32> to vector<2x32xf32>
    %cst_12 = arith.constant 8.000000e+00 : f32
    %56 = vector.broadcast %cst_12 : f32 to vector<2x32xf32>
    %57 = arith.divf %55, %56 : vector<2x32xf32>
    %cst_13 = arith.constant dense<0.000000e+00> : vector<2x32xf32>
    %58 = vector.multi_reduction <add>, %54, %cst_13 [1] : vector<2x8x32xf32> to vector<2x32xf32>
    %cst_14 = arith.constant 8.000000e+00 : f32
    %59 = vector.broadcast %cst_14 : f32 to vector<2x32xf32>
    %60 = arith.divf %58, %59 : vector<2x32xf32>
    %61 = arith.subf %60, %57 : vector<2x32xf32>
    %62 = vector.broadcast %0 : f32 to vector<2x32xf32>
    %63 = arith.mulf %61, %62 : vector<2x32xf32>
    %64 = arith.addf %57, %63 : vector<2x32xf32>
    %c0_15 = arith.constant 0 : index
    %c0_16 = arith.constant 0 : index
    %65 = vector.load %arg7[%c0_15, %c0_16] : memref<4x32xf32, #tpu.memory_space<vmem>>, vector<4x32xf32>
    %66 = vector.extract_strided_slice %64 {offsets = [0, 0], sizes = [1, 32], strides = [1, 1]} : vector<2x32xf32> to vector<1x32xf32>
    %67 = vector.broadcast %66 : vector<1x32xf32> to vector<4x32xf32>
    %68 = arith.mulf %65, %67 : vector<4x32xf32>
    %cst_17 = arith.constant dense<0.000000e+00> : vector<4xf32>
    %69 = vector.multi_reduction <add>, %68, %cst_17 [1] : vector<4x32xf32> to vector<4xf32>
    %70 = vector.shape_cast %69 : vector<4xf32> to vector<4x1xf32>
    %71 = vector.extract_strided_slice %64 {offsets = [1, 0], sizes = [1, 32], strides = [1, 1]} : vector<2x32xf32> to vector<1x32xf32>
    %72 = vector.broadcast %71 : vector<1x32xf32> to vector<4x32xf32>
    %73 = arith.mulf %65, %72 : vector<4x32xf32>
    %cst_18 = arith.constant dense<0.000000e+00> : vector<4xf32>
    %74 = vector.multi_reduction <add>, %73, %cst_18 [1] : vector<4x32xf32> to vector<4xf32>
    %75 = vector.shape_cast %74 : vector<4xf32> to vector<4x1xf32>
    %76 = tpu.concatenate %70, %75 in 0 : vector<4x1xf32>, vector<4x1xf32> -> vector<8x1xf32>
    %77 = vector.broadcast %76 : vector<8x1xf32> to vector<8x256xf32>
    %78 = arith.addf %52, %77 : vector<8x256xf32>
    %c0_19 = arith.constant 0 : index
    %c0_20 = arith.constant 0 : index
    %79 = vector.load %arg8[%c0_19, %c0_20] : memref<8x256xf32, #tpu.memory_space<vmem>>, vector<8x256xf32>
    tpu.vector_store %arg8[%c0_19, %c0_20], %78 {strides = array<i32>} : memref<8x256xf32, #tpu.memory_space<vmem>>, vector<8x256xf32>,
    return
  }
  func.func @transform_0(%arg0: i32, %arg1: memref<1xf32, #tpu.memory_space<smem>>) -> (i32, i32) {
    %c0_i32 = arith.constant 0 : i32
    %c0_i32_0 = arith.constant 0 : i32
    return %arg0, %c0_i32 : i32, i32
  }
  func.func @transform_1(%arg0: i32, %arg1: memref<1xf32, #tpu.memory_space<smem>>) -> (i32, i32) {
    %c0_i32 = arith.constant 0 : i32
    %c0_i32_0 = arith.constant 0 : i32
    return %arg0, %c0_i32 : i32, i32
  }
  func.func @transform_2(%arg0: i32, %arg1: memref<1xf32, #tpu.memory_space<smem>>) -> (i32, i32, i32) {
    %c0_i32 = arith.constant 0 : i32
    %c0_i32_0 = arith.constant 0 : i32
    %c0_i32_1 = arith.constant 0 : i32
    return %arg0, %c0_i32, %c0_i32_0 : i32, i32, i32
  }
  func.func @transform_3(%arg0: i32, %arg1: memref<1xf32, #tpu.memory_space<smem>>) -> (i32, i32, i32) {
    %c0_i32 = arith.constant 0 : i32
    %c0_i32_0 = arith.constant 0 : i32
    %c0_i32_1 = arith.constant 0 : i32
    return %arg0, %c0_i32, %c0_i32_0 : i32, i32, i32
  }
  func.func @transform_4(%arg0: i32, %arg1: memref<1xf32, #tpu.memory_space<smem>>) -> (i32, i32) {
    %c0_i32 = arith.constant 0 : i32
    %c0_i32_0 = arith.constant 0 : i32
    %c0_i32_1 = arith.constant 0 : i32
    return %c0_i32, %c0_i32_0 : i32, i32
  }
  func.func @transform_5(%arg0: i32, %arg1: memref<1xf32, #tpu.memory_space<smem>>) -> (i32, i32) {
    %c0_i32 = arith.constant 0 : i32
    %c0_i32_0 = arith.constant 0 : i32
    %c0_i32_1 = arith.constant 0 : i32
    return %c0_i32, %c0_i32_0 : i32, i32
  }
  func.func @transform_6(%arg0: i32, %arg1: memref<1xf32, #tpu.memory_space<smem>>) -> (i32, i32) {
    %c0_i32 = arith.constant 0 : i32
    %c0_i32_0 = arith.constant 0 : i32
    return %arg0, %c0_i32 : i32, i32
  }
}

</mosaic_0001>

<llo_original>
// kernel: tpu_custom_call.1
$region0: #{tpu_custom_call.1}
  #allocation0 [shape = 'u32[]', space=smem, size = 0x4, offset = 0x4, fixed_abs, tag = 'smem constant byte address 0x4 - core index']
  #allocation1 [shape = 'u32[144,128]{1,0:T(1,128)}', space=vmem, size = 0x12000, scoped, tag = 'internal scratch']
  #allocation2 [shape = 's32[1]{0}', space=sflag, size = 0x4, scoped, tag = 'scoped memory for tpu_custom_call.1']
  #allocation3 [shape = 'f32[1]{0:T(128)S(6)}', space=smem, size = 0x200, scoped, tag = 'prefetched SMEM operand 0']
  %s0 = inlined_call_operand.<no memory space> [shape: f32[1], index: 0, kind: input, shape index: {}]
  %s1 = inlined_call_operand.vmem [shape: f32[8,1], index: 1, kind: input, shape index: {}]
  %s2 = inlined_call_operand.vmem [shape: f32[8,256], index: 2, kind: input, shape index: {}]
  %s3 = inlined_call_operand.hbm [shape: f32[2,8,32], index: 3, kind: input, shape index: {}]
  %s4 = inlined_call_operand.hbm [shape: f32[2,8,32], index: 4, kind: input, shape index: {}]
  %s5 = inlined_call_operand.vmem [shape: f32[8,8], index: 5, kind: input, shape index: {}]
  %s6 = inlined_call_operand.vmem [shape: f32[4,32], index: 6, kind: input, shape index: {}]
  %s7 = inlined_call_operand.hbm [shape: f32[8,256], index: 7, kind: output, shape index: {}]
  %s8 = sld [smem:[#allocation0]]
  $region42: #{tpu_custom_call.1} parent=0
    _
  %s10 = ssub.s32 1, %s8
  %s11 = scalar_select 0, %s10, %s8
  %12 = sst [smem:[#allocation3]] %s0
  $region1: #{tpu_custom_call.1} parent=0
    #allocation4 [shape = 'u8[8192]{0}', space=vmem, size = 0x2000, scoped, tag = 'input window, operand 3, single buffered']
    #allocation5 [shape = 's32[1]{0}', space=sflag, size = 0x4, scoped, tag = 'scoped memory for tpu_custom_call.1']
    #allocation6 [shape = 's32[1]{0}', space=sflag, size = 0x4, scoped, tag = 'scoped memory for tpu_custom_call.1']
    #allocation7 [shape = 'u8[8192]{0}', space=vmem, size = 0x2000, scoped, tag = 'input window, operand 4, single buffered']
    #allocation8 [shape = 's32[1]{0}', space=sflag, size = 0x4, scoped, tag = 'scoped memory for tpu_custom_call.1']
    #allocation9 [shape = 'u8[8192]{0}', space=vmem, size = 0x2000, scoped, tag = 'output window, operand 0, single buffered']
    %13 = vsyncpa [#allocation5], 0
    %14 = vsyncpa [#allocation8], 0
    %15 = vsyncpa [#allocation6], 0
    // Predicated region
    $region2: #{tpu_custom_call.1} parent=1 // pred_check
      _
    $region3: #{tpu_custom_call.1} parent=1 // pred_check_branch
      %17 = sbr.rel (0) target = $region5
    $region4: #{tpu_custom_call.1} parent=1 // pred_region
      _
    $region5: #{tpu_custom_call.1} parent=1 // pred_fallthru
      _
    // Predicated region
    $region6: #{tpu_custom_call.1} parent=1 // pred_check
      _
    $region7: #{tpu_custom_call.1} parent=1 // pred_check_branch
      %19 = sbr.rel (0) target = $region9
    $region8: #{tpu_custom_call.1} parent=1 // pred_region
      _
    $region9: #{tpu_custom_call.1} parent=1 // pred_fallthru
      _
    // Predicated region
    $region10: #{tpu_custom_call.1} parent=1 // pred_check
      _
    $region11: #{tpu_custom_call.1} parent=1 // pred_check_branch
      %21 = sbr.rel (0) target = $region13
    $region12: #{tpu_custom_call.1} parent=1 // pred_region
      %s23 = ssub.s32 256, 256
      %24 = vsyncadd [#allocation5], %s23
      %s25 = sshll.u32 [#allocation4], 4
      %s26 = int_to_ptr.vmem [resolvable:$true] %s25
      %31 = dma.hbm_to_vmem [thread:$0]  %s3, 256, %s26, [#allocation5], 128, 128, 8
    $region13: #{tpu_custom_call.1} parent=1 // pred_fallthru
      _
    // Predicated region
    $region14: #{tpu_custom_call.1} parent=1 // pred_check
      _
    $region15: #{tpu_custom_call.1} parent=1 // pred_check_branch
      %33 = sbr.rel (0) target = $region17
    $region16: #{tpu_custom_call.1} parent=1 // pred_region
      %s35 = ssub.s32 256, 256
      %36 = vsyncadd [#allocation8], %s35
      %s37 = sshll.u32 [#allocation7], 4
      %s38 = int_to_ptr.vmem [resolvable:$true] %s37
      %43 = dma.hbm_to_vmem [thread:$0]  %s4, 256, %s38, [#allocation8], 128, 128, 8
    $region17: #{tpu_custom_call.1} parent=1 // pred_fallthru
      _
    // Predicated region
    $region18: #{tpu_custom_call.1} parent=1 // pred_check
      _
    $region19: #{tpu_custom_call.1} parent=1 // pred_check_branch
      %45 = sbr.rel (0) target = $region21
    $region20: #{tpu_custom_call.1} parent=1 // pred_region
      _
    $region21: #{tpu_custom_call.1} parent=1 // pred_fallthru
      _
    // Predicated region
    $region22: #{tpu_custom_call.1} parent=1 // pred_check
      _
    $region23: #{tpu_custom_call.1} parent=1 // pred_check_branch
      %47 = sbr.rel (0) target = $region25
    $region24: #{tpu_custom_call.1} parent=1 // pred_region
      _
    $region25: #{tpu_custom_call.1} parent=1 // pred_fallthru
      _
    // Predicated region
    $region26: #{tpu_custom_call.1} parent=1 // pred_check
      _
    $region27: #{tpu_custom_call.1} parent=1 // pred_check_branch
      %49 = sbr.rel (0) target = $region29
    $region28: #{tpu_custom_call.1} parent=1 // pred_region
      %50 = dma.done [#allocation5], 256
    $region29: #{tpu_custom_call.1} parent=1 // pred_fallthru
      _
    // Predicated region
    $region30: #{tpu_custom_call.1} parent=1 // pred_check
      _
    $region31: #{tpu_custom_call.1} parent=1 // pred_check_branch
      %52 = sbr.rel (0) target = $region33
    $region32: #{tpu_custom_call.1} parent=1 // pred_region
      %53 = dma.done [#allocation8], 256
    $region33: #{tpu_custom_call.1} parent=1 // pred_fallthru
      _
    %s54 = sld [smem:[#allocation3]]
    %v55 = vld [vmem:[%s2] sm:$0xff]
    %v56 = vld [vmem:[%s2 + $0x8] sm:$0xff]
    %v57 = vld [vmem:[%s5] sm:$0xff]
    %59 = vset.pattern.permute.xlu0 0
    %60 = vperm.xlu0 %59, %v57
    %v61 = vpop.permute.xlu0 %60
    %v63 = vlaneseq
    %v64 = vshrl.u32 %v63, 7
    %v65 = vsub.s32 0, %v64
    %v66 = vrot.slane %v55, %v65
    %v67 = vlaneseq
    %v68 = vshrl.u32 %v67, 7
    %v69 = vsub.s32 0, %v68
    %v70 = vrot.slane %v56, %v69
    %v71 = vmul.f32 %v61, %v66
    %v72 = vmul.f32 %v61, %v70
    %73 = vset.pattern.permute.xlu0 1
    %74 = vperm.xlu0 %73, %v57
    %v75 = vpop.permute.xlu0 %74
    %v77 = vlaneseq
    %v78 = vshrl.u32 %v77, 7
    %v79 = vsub.s32 1, %v78
    %v80 = vrot.slane %v55, %v79
    %v81 = vlaneseq
    %v82 = vshrl.u32 %v81, 7
    %v83 = vsub.s32 1, %v82
    %v84 = vrot.slane %v56, %v83
    %v85 = vmul.f32 %v75, %v80
    %v86 = vmul.f32 %v75, %v84
    %v87 = vadd.f32 %v71, %v85
    %v88 = vadd.f32 %v72, %v86
    %89 = vset.pattern.permute.xlu0 2
    %90 = vperm.xlu0 %89, %v57
    %v91 = vpop.permute.xlu0 %90
    %v93 = vlaneseq
    %v94 = vshrl.u32 %v93, 7
    %v95 = vsub.s32 2, %v94
    %v96 = vrot.slane %v55, %v95
    %v97 = vlaneseq
    %v98 = vshrl.u32 %v97, 7
    %v99 = vsub.s32 2, %v98
    %v100 = vrot.slane %v56, %v99
    %v101 = vmul.f32 %v91, %v96
    %v102 = vmul.f32 %v91, %v100
    %v103 = vadd.f32 %v87, %v101
    %v104 = vadd.f32 %v88, %v102
    %105 = vset.pattern.permute.xlu0 3
    %106 = vperm.xlu0 %105, %v57
    %v107 = vpop.permute.xlu0 %106
    %v109 = vlaneseq
    %v110 = vshrl.u32 %v109, 7
    %v111 = vsub.s32 3, %v110
    %v112 = vrot.slane %v55, %v111
    %v113 = vlaneseq
    %v114 = vshrl.u32 %v113, 7
    %v115 = vsub.s32 3, %v114
    %v116 = vrot.slane %v56, %v115
    %v117 = vmul.f32 %v107, %v112
    %v118 = vmul.f32 %v107, %v116
    %v119 = vadd.f32 %v103, %v117
    %v120 = vadd.f32 %v104, %v118
    %121 = vset.pattern.permute.xlu0 4
    %122 = vperm.xlu0 %121, %v57
    %v123 = vpop.permute.xlu0 %122
    %v125 = vlaneseq
    %v126 = vshrl.u32 %v125, 7
    %v127 = vsub.s32 4, %v126
    %v128 = vrot.slane %v55, %v127
    %v129 = vlaneseq
    %v130 = vshrl.u32 %v129, 7
    %v131 = vsub.s32 4, %v130
    %v132 = vrot.slane %v56, %v131
    %v133 = vmul.f32 %v123, %v128
    %v134 = vmul.f32 %v123, %v132
    %v135 = vadd.f32 %v119, %v133
    %v136 = vadd.f32 %v120, %v134
    %137 = vset.pattern.permute.xlu0 5
    %138 = vperm.xlu0 %137, %v57
    %v139 = vpop.permute.xlu0 %138
    %v141 = vlaneseq
    %v142 = vshrl.u32 %v141, 7
    %v143 = vsub.s32 5, %v142
    %v144 = vrot.slane %v55, %v143
    %v145 = vlaneseq
    %v146 = vshrl.u32 %v145, 7
    %v147 = vsub.s32 5, %v146
    %v148 = vrot.slane %v56, %v147
    %v149 = vmul.f32 %v139, %v144
    %v150 = vmul.f32 %v139, %v148
    %v151 = vadd.f32 %v135, %v149
    %v152 = vadd.f32 %v136, %v150
    %153 = vset.pattern.permute.xlu0 6
    %154 = vperm.xlu0 %153, %v57
    %v155 = vpop.permute.xlu0 %154
    %v157 = vlaneseq
    %v158 = vshrl.u32 %v157, 7
    %v159 = vsub.s32 6, %v158
    %v160 = vrot.slane %v55, %v159
    %v161 = vlaneseq
    %v162 = vshrl.u32 %v161, 7
    %v163 = vsub.s32 6, %v162
    %v164 = vrot.slane %v56, %v163
    %v165 = vmul.f32 %v155, %v160
    %v166 = vmul.f32 %v155, %v164
    %v167 = vadd.f32 %v151, %v165
    %v168 = vadd.f32 %v152, %v166
    %169 = vset.pattern.permute.xlu0 7
    %170 = vperm.xlu0 %169, %v57
    %v171 = vpop.permute.xlu0 %170
    %v173 = vlaneseq
    %v174 = vshrl.u32 %v173, 7
    %v175 = vsub.s32 7, %v174
    %v176 = vrot.slane %v55, %v175
    %v177 = vlaneseq
    %v178 = vshrl.u32 %v177, 7
    %v179 = vsub.s32 7, %v178
    %v180 = vrot.slane %v56, %v179
    %v181 = vmul.f32 %v171, %v176
    %v182 = vmul.f32 %v171, %v180
    %v183 = vadd.f32 %v167, %v181
    %v184 = vadd.f32 %v168, %v182
    %v185 = vld [vmem:[%s1] sm:$0xff]
    %187 = vset.pattern.permute.xlu0 0
    %188 = vperm.xlu0 %187, %v185
    %v189 = vpop.permute.xlu0 %188
    %v191 = vmul.f32 %v183, %v189
    %v192 = vmul.f32 %v184, %v189
    %v193 = vld [vmem:[#allocation4] sm:$0xff]
    %v194 = vld [vmem:[#allocation4 + $0x8] sm:$0xff]
    %v195 = vld [vmem:[#allocation7] sm:$0xff]
    %v196 = vld [vmem:[#allocation7 + $0x8] sm:$0xff]
    %vm197 = vcmask 261120
    %v198 = vsel %vm197, %v193, 0.0
    %v199 = vrot.slane %v198, 4
    %v200 = vadd.f32 %v198, %v199
    %v201 = vrot.slane %v200, 2
    %v202 = vadd.f32 %v200, %v201
    %v203 = vrot.slane %v202, 1
    %v204 = vadd.f32 %v202, %v203
    %v205 = vsel %vm197, %v194, 0.0
    %v206 = vrot.slane %v205, 4
    %v207 = vadd.f32 %v205, %v206
    %v208 = vrot.slane %v207, 2
    %v209 = vadd.f32 %v207, %v208
    %v210 = vrot.slane %v209, 1
    %v211 = vadd.f32 %v209, %v210
    %v212 = vrcp.pop 8.0
    %v213 = vmul.f32 %v204, %v212
    %v214 = vmul.f32 %v211, %v212
    %v215 = vsel %vm197, %v195, 0.0
    %v216 = vrot.slane %v215, 4
    %v217 = vadd.f32 %v215, %v216
    %v218 = vrot.slane %v217, 2
    %v219 = vadd.f32 %v217, %v218
    %v220 = vrot.slane %v219, 1
    %v221 = vadd.f32 %v219, %v220
    %v222 = vsel %vm197, %v196, 0.0
    %v223 = vrot.slane %v222, 4
    %v224 = vadd.f32 %v222, %v223
    %v225 = vrot.slane %v224, 2
    %v226 = vadd.f32 %v224, %v225
    %v227 = vrot.slane %v226, 1
    %v228 = vadd.f32 %v226, %v227
    %v229 = vmul.f32 %v221, %v212
    %v230 = vmul.f32 %v228, %v212
    %v231 = vsub.f32 %v229, %v213
    %v232 = vsub.f32 %v230, %v214
    %v233 = vstv %s54
    %v234 = vmul.f32 %v231, %v233
    %v235 = vmul.f32 %v232, %v233
    %v236 = vadd.f32 %v213, %v234
    %v237 = vadd.f32 %v214, %v235
    %v238 = vld [vmem:[%s6] sm:$0xf]
    %v239 = vmul.f32 %v238, %v236
    %vm240 = vcmask 257024
    %v241 = vsel %vm240, %v239, 0.0
    %242 = vadd.xlane.f32.xlu0 %v241
    %v243 = vpop.xlane.xlu0 %242
    %v244 = vmul.f32 %v238, %v237
    %v245 = vsel %vm240, %v244, 0.0
    %246 = vadd.xlane.f32.xlu0 %v245
    %v247 = vpop.xlane.xlu0 %246
    %v249 = vrot.slane %v247, 4
    %vm251 = vcmask 1043456
    %v252 = vsel %vm251, %v243, %v249
    %254 = vset.pattern.permute.xlu0 0
    %255 = vperm.xlu0 %254, %v252
    %v256 = vpop.permute.xlu0 %255
    %v258 = vadd.f32 %v191, %v256
    %v259 = vadd.f32 %v192, %v256
    %260 = vst [vmem:[#allocation9] sm:$0xff] %v258
    %261 = vst [vmem:[#allocation9 + $0x8] sm:$0xff] %v259
    // Predicated region
    $region34: #{tpu_custom_call.1} parent=1 // pred_check
      _
    $region35: #{tpu_custom_call.1} parent=1 // pred_check_branch
      %263 = sbr.rel (0) target = $region37
    $region36: #{tpu_custom_call.1} parent=1 // pred_region
      %s265 = ssub.s32 256, 256
      %266 = vsyncadd [#allocation6], %s265
      %s268 = sshll.u32 [#allocation9], 4
      %s269 = int_to_ptr.vmem [resolvable:$true] %s268
      %271 = dma.vmem_to_hbm [thread:$0]  %s269, 256, %s7, [#allocation6]
    $region37: #{tpu_custom_call.1} parent=1 // pred_fallthru
      _
    // Predicated region
    $region38: #{tpu_custom_call.1} parent=1 // pred_check
      _
    $region39: #{tpu_custom_call.1} parent=1 // pred_check_branch
      %273 = sbr.rel (0) target = $region41
    $region40: #{tpu_custom_call.1} parent=1 // pred_region
      %274 = dma.done [#allocation6], 256
    $region41: #{tpu_custom_call.1} parent=1 // pred_fallthru
      _
    %275 = vsyncpa [#allocation5], 1
    %276 = vsyncpa [#allocation8], 1
    %277 = vsyncpa [#allocation6], 1

</llo_original>
